<compile_context>
chip_gen: v5e
topology: v5e:2x2
jax: 0.10.0
libtpu: 0.0.40
codegen_flags: <defaults>
</compile_context>

<pallas_src>
import functools

import jax
import jax.numpy as jnp
from jax.experimental import pallas as pl
from jax.experimental.pallas import tpu as pltpu


def _mae_loss_kernel(pred_ref, target_ref, mask_ref, loss_ref, acc_ref, *,
                     norm_pix: bool, d: int, row_tile: int, valid_rows: int):
    i = pl.program_id(1)

    @pl.when(i == 0)
    def _():
        acc_ref[...] = jnp.zeros_like(acc_ref)

    p = pred_ref[...].astype(jnp.float32)      # (row_tile, D)
    t = target_ref[...].astype(jnp.float32)    # (row_tile, D)
    m = mask_ref[...]                          # (row_tile, 1) float32

    if norm_pix:
        inv_d = jnp.float32(1.0 / d)
        mean = jnp.sum(t, axis=-1, keepdims=True) * inv_d
        centered = t - mean
        inv_dm1 = jnp.float32(1.0 / max(d - 1, 1))   # torch .var(): unbiased
        var = jnp.sum(centered * centered, axis=-1, keepdims=True) * inv_dm1
        t = centered * jax.lax.rsqrt(var + jnp.float32(1e-6))   # EUP rsqrt

    diff = p - t
    # Lane-fold the squared error to a per-row partial so the mask multiply
    # and the accumulator live on (row_tile, 1) instead of (row_tile, D).
    row_sq = jnp.sum(diff * diff, axis=-1, keepdims=True)       # (row_tile, 1)

    # Ragged tail / grid-padding tiles: rows at or past `valid_rows` were
    # never written by the DMA (pred/target are NOT padded in HBM), so their
    # contents are unspecified.  Gate with where(), not a multiply, so
    # garbage (including NaN) cannot leak into the sum.
    row0 = (pl.program_id(0) * pl.num_programs(1) + i) * row_tile
    row_idx = row0 + jax.lax.broadcasted_iota(jnp.int32, (row_tile, 1), 0)
    contrib = jnp.where(row_idx < valid_rows, row_sq * m, jnp.float32(0.0))
    acc_ref[...] += contrib

    @pl.when(i == pl.num_programs(1) - 1)
    def _():
        inv_d = jnp.float32(1.0 / d)
        loss_ref[...] = (jnp.sum(acc_ref[...], keepdims=True) * inv_d)[None]


def _vmem_limit_bytes():
    """Generation-aware scoped-VMEM request (headroom below physical)."""
    try:
        cap = pltpu.get_tpu_info().vmem_capacity_bytes
    except Exception:
        cap = 64 * 1024 * 1024                 # unknown -> assume the small chip
    if cap >= 96 * 1024 * 1024:                # v5e / v6e: 128 MiB physical
        return 64 * 1024 * 1024
    return 48 * 1024 * 1024                    # v7x: 64 MiB physical


def _num_tensorcores():
    try:
        kind = jax.devices()[0].device_kind.lower()
    except Exception:
        return 1
    return 2 if "v7" in kind else 1            # 2 TCs/chip on v7x, 1 on v5e/v6e


def mae_loss(pred, target, mask, *, norm_pix_loss=True,
             row_tile=None, num_parallel=None):
    """pred, target: (B, N, D); mask: (B, N). Returns scalar float32 loss."""
    if norm_pix_loss == 'global':
        # TODO(synk): norm_pix_loss == 'global' needs a whole-tensor mean/var
        # pre-pass before the loss kernel; not implemented in-kernel.
        raise NotImplementedError("norm_pix_loss='global' is not supported")

    B, N, D = pred.shape
    R = B * N
    itemsize = jnp.dtype(pred.dtype).itemsize

    if num_parallel is None:
        num_parallel = _num_tensorcores()
    num_parallel = max(1, int(num_parallel))

    vmem_limit = _vmem_limit_bytes()

    # row_tile: start from a per-step streaming target, cap by a VMEM estimate
    # that also counts the f32 elementwise temporaries (p/t casts, centered,
    # diff), not just the double-buffered pipeline inputs.
    n_tmp = 4 if norm_pix_loss is True else 3

    def _est(rt):
        per_row = (2 * 2 * D * itemsize        # pred + target, double-buffered
                   + 2 * 512                   # (rt,1) mask tiles, double-buffered
                   + 512                       # (rt,1) f32 accumulator
                   + n_tmp * D * 4)            # f32 elementwise temporaries
        return rt * per_row + (2 << 20)        # fixed margin

    if row_tile is None:
        target_step_bytes = 8 * 1024 * 1024    # >= several MiB of pred+target / step
        rt = target_step_bytes // max(1, 2 * D * itemsize)
    else:
        rt = int(row_tile)
    r8 = ((R + 7) // 8) * 8
    rt = min(max(8, (rt // 8) * 8), r8)        # never bigger than the row extent
    budget = int(vmem_limit * 0.85)
    while rt > 8 and _est(rt) > budget:
        rt = max(8, ((rt // 2) // 8) * 8)
    row_tile = rt

    n_blocks = -(-R // row_tile)               # cdiv
    num_parallel = min(num_parallel, n_blocks)
    inner = -(-n_blocks // num_parallel)
    last_blk = n_blocks - 1

    pred2 = pred.reshape(R, D)                 # no pad, native dtype
    target2 = target.reshape(R, D)
    mask2 = mask.reshape(R, 1).astype(jnp.float32)   # tiny

    if num_parallel * inner > n_blocks:
        # Clamp grid-padding tiles onto the last real block; their rows fail
        # the in-kernel validity predicate so they contribute nothing.
        def data_map(p, i):
            return (jnp.minimum(p * inner + i, last_blk), 0)
    else:
        def data_map(p, i):
            return (p * inner + i, 0)

    kernel = functools.partial(
        _mae_loss_kernel, norm_pix=(norm_pix_loss is True),
        d=D, row_tile=row_tile, valid_rows=R)

    loss_parts = pl.pallas_call(
        kernel,
        out_shape=jax.ShapeDtypeStruct((num_parallel, 1, 1), jnp.float32),
        grid_spec=pltpu.PrefetchScalarGridSpec(
            num_scalar_prefetch=0,
            grid=(num_parallel, inner),
            in_specs=[
                pl.BlockSpec((row_tile, D), data_map),   # full-extent D (no 128 pad)
                pl.BlockSpec((row_tile, D), data_map),
                pl.BlockSpec((row_tile, 1), data_map),
            ],
            out_specs=pl.BlockSpec((1, 1, 1), lambda p, i: (p, 0, 0)),
            scratch_shapes=[pltpu.VMEM((row_tile, 1), jnp.float32)],
        ),
        compiler_params=pltpu.CompilerParams(
            dimension_semantics=("parallel", "arbitrary"),
            vmem_limit_bytes=vmem_limit,
        ),
    )(pred2, target2, mask2)

    # Mask count in plain JAX (tiny), final masked mean as a scalar divide.
    return jnp.sum(loss_parts) / jnp.sum(mask.astype(jnp.float32))


def _mae_loss_ref(pred, target, mask, norm_pix_loss=True):
    pred = pred.astype(jnp.float32)
    target = target.astype(jnp.float32)
    mask = mask.astype(jnp.float32)
    if norm_pix_loss is True:
        mean = jnp.mean(target, axis=-1, keepdims=True)
        var = jnp.var(target, axis=-1, keepdims=True, ddof=1)   # unbiased, like torch
        target = (target - mean) / jnp.sqrt(var + 1e-6)
    loss = (pred - target) ** 2
    loss = jnp.mean(loss, axis=-1)
    return jnp.sum(loss * mask) / jnp.sum(mask)


if __name__ == "__main__":
    key = jax.random.PRNGKey(0)
    k1, k2, k3 = jax.random.split(key, 3)

    # Test 1: f32 inputs, norm_pix_loss=True (single-tile path).
    B, N, D = 2, 8, 32
    pred = jax.random.normal(k1, (B, N, D), dtype=jnp.float32)
    target = jax.random.normal(k2, (B, N, D), dtype=jnp.float32)
    mask = (jax.random.uniform(k3, (B, N)) > 0.25).astype(jnp.float32)

    loss = jax.block_until_ready(mae_loss(pred, target, mask, norm_pix_loss=True))
    ref = _mae_loss_ref(pred, target, mask, norm_pix_loss=True)
    assert jnp.allclose(loss, ref, rtol=1e-4, atol=1e-5), (loss, ref)

    # Test 2: native bf16 inputs (no wrapper upcast), norm_pix_loss=False.
    pred_bf = pred.astype(jnp.bfloat16)
    target_bf = target.astype(jnp.bfloat16)
    loss2 = jax.block_until_ready(
        mae_loss(pred_bf, target_bf, mask, norm_pix_loss=False))
    ref2 = _mae_loss_ref(pred_bf, target_bf, mask, norm_pix_loss=False)
    assert jnp.allclose(loss2, ref2, rtol=1e-4, atol=1e-5), (loss2, ref2)

    # Test 3: ragged rows (R=74), ragged D (=48), multi-tile reduction with a
    # clamped grid-padding tile and num_parallel=2.
    k4, k5, k6 = jax.random.split(jax.random.PRNGKey(1), 3)
    B3, N3, D3 = 2, 37, 48
    pred3 = jax.random.normal(k4, (B3, N3, D3), dtype=jnp.float32)
    target3 = jax.random.normal(k5, (B3, N3, D3), dtype=jnp.float32)
    mask3 = (jax.random.uniform(k6, (B3, N3)) > 0.5).astype(jnp.float32)
    loss3 = jax.block_until_ready(
        mae_loss(pred3, target3, mask3, norm_pix_loss=True,
                 row_tile=32, num_parallel=2))
    ref3 = _mae_loss_ref(pred3, target3, mask3, norm_pix_loss=True)
    assert jnp.allclose(loss3, ref3, rtol=1e-4, atol=1e-5), (loss3, ref3)

    print("KERNEL_OK")
</pallas_src>

<mosaic_0001>
module attributes {stable_mosaic.version = 11 : i64} {
  func.func @_mae_loss_kernel(%arg0: i32, %arg1: i32, %arg2: memref<16x32xf32, #tpu.memory_space<vmem>>, %arg3: memref<16x32xf32, #tpu.memory_space<vmem>>, %arg4: memref<16x1xf32, #tpu.memory_space<vmem>>, %arg5: memref<1x1x1xf32, #tpu.memory_space<vmem>>, %arg6: memref<16x1xf32, #tpu.memory_space<vmem>>) attributes {dimension_semantics = [#tpu.dimension_semantics<parallel>, #tpu.dimension_semantics<arbitrary>], iteration_bounds = array<i64: 1, 1>, scalar_prefetch = 0 : i64, scratch_operands = 1 : i64, tpu.core_type = #tpu.core_type<tc>, window_params = [{transform_indices = @transform_0, window_bounds = array<i64: 16, 32>}, {transform_indices = @transform_1, window_bounds = array<i64: 16, 32>}, {transform_indices = @transform_2, window_bounds = array<i64: 16, 1>}, {transform_indices = @transform_3, window_bounds = array<i64: 1, 1, 1>}]} {
    %c0_i32 = arith.constant 0 : i32
    %0 = arith.cmpi eq, %arg1, %c0_i32 : i32
    %1 = arith.extui %0 : i1 to i32
    %c0_i32_0 = arith.constant 0 : i32
    %2 = arith.cmpi ne, %1, %c0_i32_0 : i32
    scf.if %2 {
      %cst_19 = arith.constant 0.000000e+00 : f32
      %43 = vector.broadcast %cst_19 : f32 to vector<16x1xf32>
      %c0_20 = arith.constant 0 : index
      %c0_21 = arith.constant 0 : index
      %44 = vector.load %arg6[%c0_20, %c0_21] : memref<16x1xf32, #tpu.memory_space<vmem>>, vector<16x1xf32>
      tpu.vector_store %arg6[%c0_20, %c0_21], %43 {strides = array<i32>} : memref<16x1xf32, #tpu.memory_space<vmem>>, vector<16x1xf32>,
    } else {
    }
    %c0 = arith.constant 0 : index
    %c0_1 = arith.constant 0 : index
    %3 = vector.load %arg2[%c0, %c0_1] : memref<16x32xf32, #tpu.memory_space<vmem>>, vector<16x32xf32>
    %c0_2 = arith.constant 0 : index
    %c0_3 = arith.constant 0 : index
    %4 = vector.load %arg3[%c0_2, %c0_3] : memref<16x32xf32, #tpu.memory_space<vmem>>, vector<16x32xf32>
    %c0_4 = arith.constant 0 : index
    %c0_5 = arith.constant 0 : index
    %5 = vector.load %arg4[%c0_4, %c0_5] : memref<16x1xf32, #tpu.memory_space<vmem>>, vector<16x1xf32>
    %cst = arith.constant dense<0.000000e+00> : vector<16xf32>
    %6 = vector.multi_reduction <add>, %4, %cst [1] : vector<16x32xf32> to vector<16xf32>
    %7 = vector.shape_cast %6 : vector<16xf32> to vector<16x1xf32>
    %cst_6 = arith.constant 3.125000e-02 : f32
    %8 = vector.broadcast %cst_6 : f32 to vector<16x1xf32>
    %9 = arith.mulf %7, %8 : vector<16x1xf32>
    %10 = vector.broadcast %9 : vector<16x1xf32> to vector<16x32xf32>
    %11 = arith.subf %4, %10 : vector<16x32xf32>
    %12 = arith.mulf %11, %11 : vector<16x32xf32>
    %cst_7 = arith.constant dense<0.000000e+00> : vector<16xf32>
    %13 = vector.multi_reduction <add>, %12, %cst_7 [1] : vector<16x32xf32> to vector<16xf32>
    %14 = vector.shape_cast %13 : vector<16xf32> to vector<16x1xf32>
    %cst_8 = arith.constant 0.0322580636 : f32
    %15 = vector.broadcast %cst_8 : f32 to vector<16x1xf32>
    %16 = arith.mulf %14, %15 : vector<16x1xf32>
    %cst_9 = arith.constant 9.99999997E-7 : f32
    %17 = vector.broadcast %cst_9 : f32 to vector<16x1xf32>
    %18 = arith.addf %16, %17 : vector<16x1xf32>
    %19 = math.rsqrt %18 : vector<16x1xf32>
    %20 = vector.broadcast %19 : vector<16x1xf32> to vector<16x32xf32>
    %21 = arith.mulf %11, %20 : vector<16x32xf32>
    %22 = arith.subf %3, %21 : vector<16x32xf32>
    %23 = arith.mulf %22, %22 : vector<16x32xf32>
    %cst_10 = arith.constant dense<0.000000e+00> : vector<16xf32>
    %24 = vector.multi_reduction <add>, %23, %cst_10 [1] : vector<16x32xf32> to vector<16xf32>
    %25 = vector.shape_cast %24 : vector<16xf32> to vector<16x1xf32>
    %c1_i32 = arith.constant 1 : i32
    %26 = arith.muli %arg0, %c1_i32 : i32
    %27 = arith.addi %26, %arg1 : i32
    %c16_i32 = arith.constant 16 : i32
    %28 = arith.muli %27, %c16_i32 : i32
    %29 = tpu.iota {dimensions = array<i32: 0>} : vector<16x1xi32>
    %30 = vector.broadcast %28 : i32 to vector<16x1xi32>
    %31 = arith.addi %30, %29 : vector<16x1xi32>
    %c16_i32_11 = arith.constant 16 : i32
    %32 = vector.broadcast %c16_i32_11 : i32 to vector<16x1xi32>
    %33 = arith.cmpi slt, %31, %32 : vector<16x1xi32>
    %34 = arith.mulf %25, %5 : vector<16x1xf32>
    %cst_12 = arith.constant 0.000000e+00 : f32
    %35 = vector.broadcast %cst_12 : f32 to vector<16x1xf32>
    %36 = arith.select %33, %34, %35 : vector<16x1xi1>, vector<16x1xf32>
    %c0_13 = arith.constant 0 : index
    %c0_14 = arith.constant 0 : index
    %37 = vector.load %arg6[%c0_13, %c0_14] : memref<16x1xf32, #tpu.memory_space<vmem>>, vector<16x1xf32>
    %38 = arith.addf %37, %36 : vector<16x1xf32>
    %c0_15 = arith.constant 0 : index
    %c0_16 = arith.constant 0 : index
    %39 = vector.load %arg6[%c0_15, %c0_16] : memref<16x1xf32, #tpu.memory_space<vmem>>, vector<16x1xf32>
    tpu.vector_store %arg6[%c0_15, %c0_16], %38 {strides = array<i32>} : memref<16x1xf32, #tpu.memory_space<vmem>>, vector<16x1xf32>,
    %c0_i32_17 = arith.constant 0 : i32
    %40 = arith.cmpi eq, %arg1, %c0_i32_17 : i32
    %41 = arith.extui %40 : i1 to i32
    %c0_i32_18 = arith.constant 0 : i32
    %42 = arith.cmpi ne, %41, %c0_i32_18 : i32
    scf.if %42 {
      %c0_19 = arith.constant 0 : index
      %c0_20 = arith.constant 0 : index
      %43 = vector.load %arg6[%c0_19, %c0_20] : memref<16x1xf32, #tpu.memory_space<vmem>>, vector<16x1xf32>
      %44 = vector.shape_cast %43 : vector<16x1xf32> to vector<1x16x1xf32>
      %cst_21 = arith.constant dense<0.000000e+00> : vector<1xf32>
      %45 = vector.multi_reduction <add>, %44, %cst_21 [1, 2] : vector<1x16x1xf32> to vector<1xf32>
      %46 = vector.shape_cast %45 : vector<1xf32> to vector<1x1x1xf32>
      %47 = vector.extract %46[0, 0, 0] : f32 from vector<1x1x1xf32>
      %48 = vector.broadcast %47 : f32 to vector<1x1xf32>
      %cst_22 = arith.constant 3.125000e-02 : f32
      %49 = vector.broadcast %cst_22 : f32 to vector<1x1xf32>
      %50 = arith.mulf %48, %49 : vector<1x1xf32>
      %51 = vector.shape_cast %50 : vector<1x1xf32> to vector<1x1x1xf32>
      %c0_23 = arith.constant 0 : index
      %c0_24 = arith.constant 0 : index
      %c0_25 = arith.constant 0 : index
      %52 = vector.load %arg5[%c0_23, %c0_24, %c0_25] : memref<1x1x1xf32, #tpu.memory_space<vmem>>, vector<1x1x1xf32>
      tpu.vector_store %arg5[%c0_23, %c0_24, %c0_25], %51 {strides = array<i32>} : memref<1x1x1xf32, #tpu.memory_space<vmem>>, vector<1x1x1xf32>,
    } else {
    }
    return
  }
  func.func @transform_0(%arg0: i32, %arg1: i32) -> (i32, i32) {
    %c1_i32 = arith.constant 1 : i32
    %0 = arith.muli %arg0, %c1_i32 : i32
    %1 = arith.addi %0, %arg1 : i32
    %c0_i32 = arith.constant 0 : i32
    %c0_i32_0 = arith.constant 0 : i32
    return %1, %c0_i32 : i32, i32
  }
  func.func @transform_1(%arg0: i32, %arg1: i32) -> (i32, i32) {
    %c1_i32 = arith.constant 1 : i32
    %0 = arith.muli %arg0, %c1_i32 : i32
    %1 = arith.addi %0, %arg1 : i32
    %c0_i32 = arith.constant 0 : i32
    %c0_i32_0 = arith.constant 0 : i32
    return %1, %c0_i32 : i32, i32
  }
  func.func @transform_2(%arg0: i32, %arg1: i32) -> (i32, i32) {
    %c1_i32 = arith.constant 1 : i32
    %0 = arith.muli %arg0, %c1_i32 : i32
    %1 = arith.addi %0, %arg1 : i32
    %c0_i32 = arith.constant 0 : i32
    %c0_i32_0 = arith.constant 0 : i32
    return %1, %c0_i32 : i32, i32
  }
  func.func @transform_3(%arg0: i32, %arg1: i32) -> (i32, i32, i32) {
    %c0_i32 = arith.constant 0 : i32
    %c0_i32_0 = arith.constant 0 : i32
    %c0_i32_1 = arith.constant 0 : i32
    return %arg0, %c0_i32, %c0_i32_0 : i32, i32, i32
  }
}

</mosaic_0001>

<llo_original>
// kernel: tpu_custom_call.1
$region0: #{tpu_custom_call.1}
  #allocation0 [shape = 'u32[]', space=smem, size = 0x4, offset = 0x4, fixed_abs, tag = 'smem constant byte address 0x4 - core index']
  #allocation1 [shape = 'u32[72,128]{1,0:T(1,128)}', space=vmem, size = 0x9000, scoped, tag = 'internal scratch']
  #allocation2 [shape = 'f32[16,1]{1,0:T(8,128)}', space=vmem, size = 0x2000, scoped, tag = 'scratch operand']
  %s0 = inlined_call_operand.vmem [shape: f32[16,32], index: 0, kind: input, shape index: {}]
  %s1 = inlined_call_operand.hbm [shape: f32[16,32], index: 1, kind: input, shape index: {}]
  %s2 = inlined_call_operand.vmem [shape: f32[16,1], index: 2, kind: input, shape index: {}]
  %s3 = inlined_call_operand.hbm [shape: f32[1,1,1], index: 3, kind: output, shape index: {}]
  %s4 = sld [smem:[#allocation0]]
  $region34: #{tpu_custom_call.1} parent=0
    _
  %s6 = ssub.s32 1, %s4
  %s7 = scalar_select 0, %s6, %s4
  $region1: #{tpu_custom_call.1} parent=0
    #allocation3 [shape = 'u8[8192]{0}', space=vmem, size = 0x2000, scoped, tag = 'input window, operand 1, single buffered']
    #allocation4 [shape = 's32[1]{0}', space=sflag, size = 0x4, scoped, tag = 'scoped memory for tpu_custom_call.1']
    #allocation5 [shape = 's32[1]{0}', space=sflag, size = 0x4, scoped, tag = 'scoped memory for tpu_custom_call.1']
    #allocation6 [shape = 'u8[512]{0}', space=vmem, size = 0x400, scoped, tag = 'output window, operand 0, single buffered']
    %8 = vsyncpa [#allocation4], 0
    %9 = vsyncpa [#allocation5], 0
    // Predicated region
    $region2: #{tpu_custom_call.1} parent=1 // pred_check
      _
    $region3: #{tpu_custom_call.1} parent=1 // pred_check_branch
      %11 = sbr.rel (0) target = $region5
    $region4: #{tpu_custom_call.1} parent=1 // pred_region
      %s12 = sadd.s32 0, 0
      %s13 = smul.u32 2, %s12
      %p14 = scmp.lt.s32.totalorder %s13, 1
      %s15 = scalar_select %p14, %s13, 1
      %s16 = smul.addr %s15, 8
      %s17 = scalar_lea.vmem %s0, %s16
      %s18 = sadd.s32 0, 0
      %s19 = smul.u32 2, %s18
    $region5: #{tpu_custom_call.1} parent=1 // pred_fallthru
      _
    // Predicated region
    $region6: #{tpu_custom_call.1} parent=1 // pred_check
      _
    $region7: #{tpu_custom_call.1} parent=1 // pred_check_branch
      %21 = sbr.rel (0) target = $region9
    $region8: #{tpu_custom_call.1} parent=1 // pred_region
      %s22 = sadd.s32 0, 0
      %s23 = smul.u32 2, %s22
      %25 = vsyncadd [#allocation4], 0
      %s26 = smul.addr %s23, 8
      %s27 = scalar_lea.hbm %s1, %s26
      %s28 = sshll.u32 %s27, 4
      %s29 = int_to_ptr.hbm [resolvable:$true] %s28
      %s30 = sshll.u32 [#allocation3], 4
      %s31 = int_to_ptr.vmem [resolvable:$true] %s30
      %36 = dma.hbm_to_vmem [thread:$0]  %s29, 256, %s31, [#allocation4], 128, 128, 8
    $region9: #{tpu_custom_call.1} parent=1 // pred_fallthru
      _
    // Predicated region
    $region10: #{tpu_custom_call.1} parent=1 // pred_check
      _
    $region11: #{tpu_custom_call.1} parent=1 // pred_check_branch
      %38 = sbr.rel (0) target = $region13
    $region12: #{tpu_custom_call.1} parent=1 // pred_region
      %s39 = sadd.s32 0, 0
      %s40 = smul.u32 2, %s39
      %p41 = scmp.lt.s32.totalorder %s40, 1
      %s42 = scalar_select %p41, %s40, 1
      %s43 = smul.addr %s42, 8
      %s44 = scalar_lea.vmem %s2, %s43
      %s45 = sadd.s32 0, 0
      %s46 = smul.u32 2, %s45
    $region13: #{tpu_custom_call.1} parent=1 // pred_fallthru
      _
    // Predicated region
    $region14: #{tpu_custom_call.1} parent=1 // pred_check
      _
    $region15: #{tpu_custom_call.1} parent=1 // pred_check_branch
      %48 = sbr.rel (0) target = $region17
    $region16: #{tpu_custom_call.1} parent=1 // pred_region
      %50 = dma.done [#allocation4], 256
    $region17: #{tpu_custom_call.1} parent=1 // pred_fallthru
      _
    %s51 = sadd.s32 0, 0
    %s52 = smul.u32 2, %s51
    %p53 = scmp.lt.s32.totalorder %s52, 1
    %s54 = scalar_select %p53, %s52, 1
    %s55 = smul.addr %s54, 8
    %s56 = scalar_lea.vmem %s0, %s55
    %s57 = sadd.s32 0, 0
    %s58 = smul.u32 2, %s57
    %p59 = scmp.lt.s32.totalorder %s58, 1
    %s60 = scalar_select %p59, %s58, 1
    %s61 = smul.addr %s60, 8
    %s62 = scalar_lea.vmem %s2, %s61
    %s63 = sadd.s32 0, 0
    %s64 = smul.u32 2, %s63
    %p65 = scmp.lt.s32.totalorder %s64, 1
    %s66 = scalar_select %p65, %s64, 1
    %s67 = smul.addr %s66, 8
    %s68 = scalar_lea.vmem %s0, %s67
    %s69 = sadd.s32 0, 0
    %s70 = smul.u32 2, %s69
    %s71 = sadd.s32 0, 0
    %s72 = smul.u32 2, %s71
    %s73 = sadd.s32 0, 0
    %s74 = smul.u32 2, %s73
    %p75 = scmp.lt.s32.totalorder %s74, 1
    %s76 = scalar_select %p75, %s74, 1
    %s77 = smul.addr %s76, 8
    %s78 = scalar_lea.vmem %s2, %s77
    %s79 = sadd.s32 0, 0
    %s80 = smul.u32 2, %s79
    %p81 = scmp.eq.s32.totalorder 0, 0
    // Predicated region
    $region18: #{tpu_custom_call.1} parent=1 // pred_check
      %p82 = pneg %p81
    $region19: #{tpu_custom_call.1} parent=1 // pred_check_branch
      %84 = sbr.rel (%p82) target = $region21
    $region20: #{tpu_custom_call.1} parent=1 // pred_region
      %vm85 = vcmask 7168
      %86 = vst.msk [vmem:[#allocation2] sm:$0xff] %vm85, 0.0
      %87 = vst.msk [vmem:[#allocation2 + $0x8] sm:$0xff] %vm85, 0.0
    $region21: #{tpu_custom_call.1} parent=1 // pred_fallthru
      _
    %v88 = vld [vmem:[%s68] sm:$0xff]
    %v89 = vld [vmem:[%s68 + $0x8] sm:$0xff]
    %v90 = vld [vmem:[#allocation3] sm:$0xff]
    %v91 = vld [vmem:[#allocation3 + $0x8] sm:$0xff]
    %v92 = vld [vmem:[%s78] sm:$0xff]
    %v93 = vld [vmem:[%s78 + $0x8] sm:$0xff]
    %vm94 = vcmask 261120
    %v95 = vsel %vm94, %v90, 0.0
    %96 = vadd.xlane.f32.xlu0 %v95
    %v97 = vpop.xlane.xlu0 %96
    %v98 = vsel %vm94, %v91, 0.0
    %99 = vadd.xlane.f32.xlu0 %v98
    %v100 = vpop.xlane.xlu0 %99
    %v101 = vmul.f32 %v97, 0.03125
    %v102 = vmul.f32 %v100, 0.03125
    %v103 = vsub.f32 %v90, %v101
    %v104 = vsub.f32 %v91, %v102
    %v105 = vmul.f32 %v103, %v103
    %v106 = vmul.f32 %v104, %v104
    %v107 = vsel %vm94, %v105, 0.0
    %108 = vadd.xlane.f32.xlu0 %v107
    %v109 = vpop.xlane.xlu0 %108
    %v110 = vsel %vm94, %v106, 0.0
    %111 = vadd.xlane.f32.xlu0 %v110
    %v112 = vpop.xlane.xlu0 %111
    %v113 = vmul.f32 %v109, 0.032258064
    %v114 = vmul.f32 %v112, 0.032258064
    %v115 = vadd.f32 %v113, 1e-06
    %v116 = vadd.f32 %v114, 1e-06
    %v117 = vrsqrt.pop %v115
    %v118 = vmul.f32 %v117, %v115
    %v119 = vmul.f32 %v118, %v117
    %v120 = vmul.f32 0.5, %v119
    %v121 = vsub.f32 1.5, %v120
    %v122 = vmul.f32 %v117, %v121
    %vm123 = vweird.f32 %v115
    %vm124 = vweird.f32 %v117
    %vm125 = vmor %vm123, %vm124
    %v126 = vsel %vm125, %v117, %v122
    %v127 = vrsqrt.pop %v116
    %v128 = vmul.f32 %v127, %v116
    %v129 = vmul.f32 %v128, %v127
    %v130 = vmul.f32 0.5, %v129
    %v131 = vsub.f32 1.5, %v130
    %v132 = vmul.f32 %v127, %v131
    %vm133 = vweird.f32 %v116
    %vm134 = vweird.f32 %v127
    %vm135 = vmor %vm133, %vm134
    %v136 = vsel %vm135, %v127, %v132
    %v137 = vmul.f32 %v103, %v126
    %v138 = vmul.f32 %v104, %v136
    %v139 = vsub.f32 %v88, %v137
    %v140 = vsub.f32 %v89, %v138
    %v141 = vmul.f32 %v139, %v139
    %v142 = vmul.f32 %v140, %v140
    %v143 = vsel %vm94, %v141, 0.0
    %144 = vadd.xlane.f32.xlu0 %v143
    %v145 = vpop.xlane.xlu0 %144
    %v146 = vsel %vm94, %v142, 0.0
    %147 = vadd.xlane.f32.xlu0 %v146
    %v148 = vpop.xlane.xlu0 %147
    %s149 = sadd.s32 0, 0
    %s150 = smul.u32 %s149, 16
    %v151 = vlaneseq
    %v152 = vshrl.u32 %v151, 7
    %v153 = vadd.s32 %v152, 8
    %v154 = vstv %s150
    %v155 = vadd.s32 %v154, %v152
    %v156 = vadd.s32 %v154, %v153
    %vm157 = vcmp.lt.s32.totalorder %v155, 16
    %vm158 = vcmp.lt.s32.totalorder %v156, 16
    %v159 = vmul.f32 %v145, %v92
    %v160 = vmul.f32 %v148, %v93
    %v161 = vsel %vm157, %v159, 0.0
    %v162 = vsel %vm158, %v160, 0.0
    %v163 = vld [vmem:[#allocation2] sm:$0xff]
    %v164 = vld [vmem:[#allocation2 + $0x8] sm:$0xff]
    %v165 = vadd.f32 %v163, %v161
    %v166 = vadd.f32 %v164, %v162
    %vm167 = vcmask 7168
    %168 = vst.msk [vmem:[#allocation2] sm:$0xff] %vm167, %v165
    %169 = vst.msk [vmem:[#allocation2 + $0x8] sm:$0xff] %vm167, %v166
    // Predicated region
    $region22: #{tpu_custom_call.1} parent=1 // pred_check
      %p170 = pneg %p81
    $region23: #{tpu_custom_call.1} parent=1 // pred_check_branch
      %172 = sbr.rel (%p170) target = $region25
    $region24: #{tpu_custom_call.1} parent=1 // pred_region
      %v173 = vld [vmem:[#allocation2] sm:$0xff]
      %v174 = vld [vmem:[#allocation2 + $0x8] sm:$0xff]
      %v175 = vsel %vm167, %v173, 0.0
      %v176 = vsel %vm167, %v174, 0.0
      %v177 = vadd.f32 %v175, %v176
      %178 = vadd.xlane.f32.xlu0 %v177
      %v179 = vpop.xlane.xlu0 %178
      %v180 = vrot.slane %v179, 4
      %v181 = vadd.f32 %v179, %v180
      %v182 = vrot.slane %v181, 2
      %v183 = vadd.f32 %v181, %v182
      %v184 = vrot.slane %v183, 1
      %v185 = vadd.f32 %v183, %v184
      %s186 = vtos %v185
      %v187 = vstv %s186
      %v188 = vmul.f32 %v187, 0.03125
      %vm189 = vcmask 0
      %190 = vst.msk [vmem:[#allocation6] sm:$0x1] %vm189, %v188
    $region25: #{tpu_custom_call.1} parent=1 // pred_fallthru
      _
    // Predicated region
    $region26: #{tpu_custom_call.1} parent=1 // pred_check
      _
    $region27: #{tpu_custom_call.1} parent=1 // pred_check_branch
      %192 = sbr.rel (0) target = $region29
    $region28: #{tpu_custom_call.1} parent=1 // pred_region
      %194 = vsyncadd [#allocation5], 0
      %s196 = sshll.u32 [#allocation6], 4
      %s197 = int_to_ptr.vmem [resolvable:$true] %s196
      %s198 = sshll.u32 %s3, 4
      %s199 = int_to_ptr.hbm [resolvable:$true] %s198
      %201 = dma.vmem_to_hbm [thread:$0]  %s197, 16, %s199, [#allocation5]
    $region29: #{tpu_custom_call.1} parent=1 // pred_fallthru
      _
    // Predicated region
    $region30: #{tpu_custom_call.1} parent=1 // pred_check
      _
    $region31: #{tpu_custom_call.1} parent=1 // pred_check_branch
      %203 = sbr.rel (0) target = $region33
    $region32: #{tpu_custom_call.1} parent=1 // pred_region
      %205 = dma.done [#allocation5], 16
    $region33: #{tpu_custom_call.1} parent=1 // pred_fallthru
      _
    %206 = vsyncpa [#allocation4], 1
    %207 = vsyncpa [#allocation5], 1

</llo_original>
